<compile_context>
chip_gen: v6e
topology: v6e:2x2x1
jax: 0.10.0
libtpu: 0.0.40
codegen_flags: <defaults>
</compile_context>

<pallas_src>
import functools

import jax
import jax.numpy as jnp
from jax.experimental import pallas as pl
from jax.experimental.pallas import tpu as pltpu

_INV_SQRT2 = 0.7071067811865476


def _round_up(n, m):
    return ((n + m - 1) // m) * m


def _vmem_capacity_bytes():
    # Host-side hardware query; conservative fallback = v7x (64 MiB / core).
    try:
        return int(pltpu.get_tpu_info().vmem_capacity_bytes)
    except Exception:
        return 64 << 20


def _layer_norm(x_f32, inv_dim, n_pad, eps):
    """Two-pass LayerNorm over the true feature dim (pad lanes are zero)."""
    mean = jnp.sum(x_f32, axis=-1, keepdims=True) * inv_dim
    xc = x_f32 - mean
    ss = jnp.sum(xc * xc, axis=-1, keepdims=True)
    if n_pad:  # static: padded lanes contribute exactly n_pad * mean^2
        ss = ss - n_pad * (mean * mean)
    var = jnp.maximum(ss * inv_dim, 0.0)
    return xc * jax.lax.rsqrt(var + eps)


def _gelu_exact(h):
    # nn.GELU default (approximate='none'): exact erf-based GELU.
    return 0.5 * h * (1.0 + jax.lax.erf(h * _INV_SQRT2))


# --------------------------------------------------------------------------
# Kernels
# --------------------------------------------------------------------------
def _ffn_kernel_resident(x_ref, w1_ref, b1_ref, w2_ref, b2_ref, o_ref, *,
                         eps, inv_dim, n_pad):
    """Weights fully VMEM-resident; grid iterates over row tiles only."""
    xn = _layer_norm(x_ref[...].astype(jnp.float32), inv_dim, n_pad, eps)
    # LN affine (gamma/beta) is pre-folded into w1/b1 at prep time.
    h = jnp.dot(xn.astype(jnp.bfloat16), w1_ref[...],
                preferred_element_type=jnp.float32) + b1_ref[...]
    h = _gelu_exact(h)
    # Dropout: inference-mode identity.
    y = jnp.dot(h.astype(jnp.bfloat16), w2_ref[...],
                preferred_element_type=jnp.float32) + b2_ref[...]
    o_ref[...] = y.astype(o_ref.dtype)


def _ffn_kernel_tiled(x_ref, w1_ref, b1_ref, w2_ref, b2_ref, o_ref,
                      xn_scr, acc_scr, *, eps, inv_dim, n_pad):
    """Hidden-dim tiled path for large weights (v7x 64-MiB VMEM).

    Grid = (row_tiles, hidden_tiles). The hidden axis is the N axis of GEMM1
    and the K (reduction) axis of GEMM2, accumulated into an f32 scratch.
    """
    j = pl.program_id(1)

    @pl.when(j == 0)
    def _():
        xn = _layer_norm(x_ref[...].astype(jnp.float32), inv_dim, n_pad, eps)
        xn_scr[...] = xn.astype(jnp.bfloat16)
        acc_scr[...] = jnp.zeros_like(acc_scr)

    h = jnp.dot(xn_scr[...], w1_ref[...],
                preferred_element_type=jnp.float32) + b1_ref[...]
    h = _gelu_exact(h)
    acc_scr[...] += jnp.dot(h.astype(jnp.bfloat16), w2_ref[...],
                            preferred_element_type=jnp.float32)

    @pl.when(j == pl.num_programs(1) - 1)
    def _():
        o_ref[...] = (acc_scr[...] + b2_ref[...]).astype(o_ref.dtype)


# --------------------------------------------------------------------------
# One-time parameter preparation (init-time, NOT per call)
# --------------------------------------------------------------------------
def prepare_ffn_params(gamma, beta, w1, b1, w2, b2):
    """Fold LN affine into W1/b1, pad to lane multiples, cast weights to bf16.

    (xn * gamma + beta) @ W1 + b1 == xn @ (gamma[:,None] * W1) + (beta @ W1 + b1)
    """
    dim, hidden = w1.shape
    dim_p, hidden_p = _round_up(dim, 128), _round_up(hidden, 128)
    f32, bf16 = jnp.float32, jnp.bfloat16

    w1f = gamma.astype(f32)[:, None] * w1.astype(f32)
    b1f = beta.astype(f32) @ w1.astype(f32) + b1.astype(f32)
    w1b = w1f.astype(bf16)
    w2b = w2.astype(bf16)
    b2f = b2.astype(f32)

    if (dim_p, hidden_p) == (dim, hidden):
        w1_p, b1_p = w1b, b1f.reshape(1, hidden)
        w2_p, b2_p = w2b, b2f.reshape(1, dim)
    else:
        w1_p = jnp.zeros((dim_p, hidden_p), bf16).at[:dim, :hidden].set(w1b)
        b1_p = jnp.zeros((1, hidden_p), f32).at[0, :hidden].set(b1f)
        w2_p = jnp.zeros((hidden_p, dim_p), bf16).at[:hidden, :dim].set(w2b)
        b2_p = jnp.zeros((1, dim_p), f32).at[0, :dim].set(b2f)

    return dict(dim=dim, hidden=hidden, dim_p=dim_p, hidden_p=hidden_p,
                w1=w1_p, b1=b1_p, w2=w2_p, b2=b2_p)


# --------------------------------------------------------------------------
# Wrapper
# --------------------------------------------------------------------------
def feed_forward_module(x, params, *, eps=1e-5, tile_rows=None,
                        force_tiled=False, max_hidden_tile=None):
    """x: (batch, seq, dim) -> (batch, seq, dim). Dropout = identity (eval)."""
    batch, seq, dim = x.shape
    assert dim == params["dim"]
    hidden = params["hidden"]
    dim_p, hidden_p = params["dim_p"], params["hidden_p"]
    rows = batch * seq
    x_bytes = jnp.dtype(x.dtype).itemsize

    vmem_cap = _vmem_capacity_bytes()
    budget = int(vmem_cap * 0.85)          # never exceed physical VMEM (v7x: 64 MiB)
    if tile_rows is None:
        # 512-row tiles on 128-MiB parts (v5e/v6e), 256 on 64-MiB (v7x).
        tile_rows = 512 if vmem_cap >= (100 << 20) else 256

    # Balanced row tiles; >=2 tiles (when rows allow) so the "parallel" row
    # axis spans both v7x TensorCores.  Waste is bounded by < 8 rows per tile.
    nt = max(pl.cdiv(rows, tile_rows), 1)
    if nt < 2 and rows > 8:
        nt = 2
    tr = _round_up(pl.cdiv(rows, nt), 8)
    nt = pl.cdiv(rows, tr)
    rows_p = nt * tr
    grid_rows = nt

    w_bytes = (dim_p * hidden_p + hidden_p * dim_p) * 2   # bf16 W1 + W2

    def resident_need(tr_):
        return (4 * tr_ * dim_p * x_bytes        # x + out tiles, double-buffered
                + 2 * w_bytes                    # weights (2 pipeline buffers)
                + 4 * (hidden_p + dim_p) * 4     # biases
                + tr_ * hidden_p * 4             # h intermediate (f32)
                + 4 * tr_ * dim_p * 4)           # LN temporaries

    def tiled_need(tr_, th_):
        return (4 * tr_ * dim_p * x_bytes
                + 2 * (dim_p * th_ + th_ * dim_p) * 2   # W1/W2 blocks, 2 buffers
                + 4 * (th_ + dim_p) * 4
                + tr_ * th_ * 4                          # h intermediate (f32)
                + tr_ * dim_p * (2 + 4)                  # xn (bf16) + acc (f32)
                + 4 * tr_ * dim_p * 4)

    use_tiled = force_tiled or (resident_need(tr) * 12 // 10 > budget)

    common = dict(eps=eps, inv_dim=1.0 / dim, n_pad=float(dim_p - dim))

    # Pad activations only when necessary (aligned shapes: free reshape only).
    x2d = x.reshape(rows, dim)
    padded = (rows_p != rows) or (dim_p != dim)
    if padded:
        x2d = jnp.zeros((rows_p, dim_p), x.dtype).at[:rows, :dim].set(x2d)

    cost = pl.CostEstimate(
        flops=4 * rows_p * dim_p * hidden_p,             # two GEMMs
        transcendentals=rows_p * hidden_p,               # erf
        bytes_accessed=2 * rows_p * dim_p * x_bytes + w_bytes,
    )
    args = (x2d, params["w1"], params["b1"], params["w2"], params["b2"])

    if not use_tiled:
        vmem_limit = int(min(max(resident_need(tr) * 3 // 2, 32 << 20), budget))
        out = pl.pallas_call(
            functools.partial(_ffn_kernel_resident, **common),
            out_shape=jax.ShapeDtypeStruct((rows_p, dim_p), x.dtype),
            grid_spec=pltpu.PrefetchScalarGridSpec(
                num_scalar_prefetch=0,
                grid=(grid_rows,),
                in_specs=[
                    pl.BlockSpec((tr, dim_p), lambda i: (i, 0)),      # x rows
                    # Constant index maps -> fetched once, VMEM-resident.
                    pl.BlockSpec((dim_p, hidden_p), lambda i: (0, 0)),  # W1'
                    pl.BlockSpec((1, hidden_p), lambda i: (0, 0)),      # b1'
                    pl.BlockSpec((hidden_p, dim_p), lambda i: (0, 0)),  # W2
                    pl.BlockSpec((1, dim_p), lambda i: (0, 0)),         # b2
                ],
                out_specs=pl.BlockSpec((tr, dim_p), lambda i: (i, 0)),
            ),
            compiler_params=pltpu.CompilerParams(
                dimension_semantics=("parallel",),
                vmem_limit_bytes=vmem_limit),
            cost_estimate=cost,
        )(*args)
    else:
        # Choose hidden tile th: multiple of 128 that divides hidden_p and fits.
        n_lane_blocks = hidden_p // 128
        th = 128
        for k in range(1, n_lane_blocks + 1):
            if n_lane_blocks % k:
                continue
            cand = hidden_p // k
            if max_hidden_tile is not None and cand > max_hidden_tile:
                continue
            if tiled_need(tr, cand) * 12 // 10 <= budget:
                th = cand
                break
        grid_h = hidden_p // th
        vmem_limit = int(min(max(tiled_need(tr, th) * 3 // 2, 32 << 20), budget))
        out = pl.pallas_call(
            functools.partial(_ffn_kernel_tiled, **common),
            out_shape=jax.ShapeDtypeStruct((rows_p, dim_p), x.dtype),
            grid_spec=pltpu.PrefetchScalarGridSpec(
                num_scalar_prefetch=0,
                grid=(grid_rows, grid_h),
                in_specs=[
                    pl.BlockSpec((tr, dim_p), lambda i, j: (i, 0)),     # x rows
                    pl.BlockSpec((dim_p, th), lambda i, j: (0, j)),     # W1' cols
                    pl.BlockSpec((1, th), lambda i, j: (0, j)),         # b1' slab
                    pl.BlockSpec((th, dim_p), lambda i, j: (j, 0)),     # W2 rows
                    pl.BlockSpec((1, dim_p), lambda i, j: (0, 0)),      # b2
                ],
                out_specs=pl.BlockSpec((tr, dim_p), lambda i, j: (i, 0)),
                scratch_shapes=[pltpu.VMEM((tr, dim_p), jnp.bfloat16),  # xn
                                pltpu.VMEM((tr, dim_p), jnp.float32)],  # acc
            ),
            compiler_params=pltpu.CompilerParams(
                dimension_semantics=("parallel", "arbitrary"),
                vmem_limit_bytes=vmem_limit),
            cost_estimate=cost,
        )(*args)

    if padded:
        out = out[:rows, :dim]
    return out.reshape(batch, seq, dim)


# --------------------------------------------------------------------------
# Reference & self-test
# --------------------------------------------------------------------------
def _reference(x, gamma, beta, w1, b1, w2, b2, eps=1e-5):
    xf = x.astype(jnp.float32)
    mean = jnp.mean(xf, axis=-1, keepdims=True)
    var = jnp.mean((xf - mean) ** 2, axis=-1, keepdims=True)
    xn = (xf - mean) / jnp.sqrt(var + eps) * gamma + beta
    h = xn @ w1 + b1
    h = 0.5 * h * (1.0 + jax.lax.erf(h / jnp.sqrt(2.0)))
    y = h @ w2 + b2
    return y.astype(x.dtype)


if __name__ == "__main__":
    def run_case(batch, seq, dim, expansion, key, **kw):
        hidden = dim * expansion
        ks = jax.random.split(key, 7)
        x = jax.random.normal(ks[0], (batch, seq, dim), jnp.float32)
        gamma = 1.0 + 0.1 * jax.random.normal(ks[1], (dim,), jnp.float32)
        beta = 0.1 * jax.random.normal(ks[2], (dim,), jnp.float32)
        w1 = jax.random.normal(ks[3], (dim, hidden), jnp.float32) * 0.05
        b1 = jax.random.normal(ks[4], (hidden,), jnp.float32) * 0.01
        w2 = jax.random.normal(ks[5], (hidden, dim), jnp.float32) * 0.05
        b2 = jax.random.normal(ks[6], (dim,), jnp.float32) * 0.01

        params = prepare_ffn_params(gamma, beta, w1, b1, w2, b2)
        y = jax.block_until_ready(feed_forward_module(x, params, **kw))

        y_ref = _reference(x, gamma, beta, w1, b1, w2, b2)
        assert y.shape == x.shape
        max_err = float(jnp.max(jnp.abs(y - y_ref)))
        # bf16 matmul operands -> slightly looser tolerance vs f32 reference.
        assert jnp.allclose(y, y_ref, atol=2e-2, rtol=2e-2), (
            f"mismatch vs reference (max abs err {max_err})")

    key = jax.random.PRNGKey(0)
    k1, k2 = jax.random.split(key)
    # 1) Resident-weights path; unaligned dim exercises lane padding.
    run_case(2, 8, 32, 4, k1)
    # 2) Hidden-tiled (K-accumulating) fallback path; aligned dims exercise
    #    the no-padding fast path and the accumulator across 4 hidden tiles.
    run_case(2, 16, 128, 4, k2, force_tiled=True, max_hidden_tile=128)

    print("KERNEL_OK")
</pallas_src>

<mosaic_0001>
module attributes {stable_mosaic.version = 11 : i64} {
  func.func @_ffn_kernel_resident(%arg0: i32, %arg1: memref<8x128xf32, #tpu.memory_space<vmem>>, %arg2: memref<128x128xbf16, #tpu.memory_space<vmem>>, %arg3: memref<1x128xf32, #tpu.memory_space<vmem>>, %arg4: memref<128x128xbf16, #tpu.memory_space<vmem>>, %arg5: memref<1x128xf32, #tpu.memory_space<vmem>>, %arg6: memref<8x128xf32, #tpu.memory_space<vmem>>) attributes {dimension_semantics = [#tpu.dimension_semantics<parallel>], iteration_bounds = array<i64: 2>, scalar_prefetch = 0 : i64, scratch_operands = 0 : i64, tpu.core_type = #tpu.core_type<tc>, window_params = [{transform_indices = @transform_0, window_bounds = array<i64: 8, 128>}, {pipeline_mode = #tpu.pipeline_mode<synchronous>, transform_indices = @transform_1, window_bounds = array<i64: 128, 128>}, {pipeline_mode = #tpu.pipeline_mode<synchronous>, transform_indices = @transform_2, window_bounds = array<i64: 1, 128>}, {pipeline_mode = #tpu.pipeline_mode<synchronous>, transform_indices = @transform_3, window_bounds = array<i64: 128, 128>}, {pipeline_mode = #tpu.pipeline_mode<synchronous>, transform_indices = @transform_4, window_bounds = array<i64: 1, 128>}, {transform_indices = @transform_5, window_bounds = array<i64: 8, 128>}]} {
    %c0 = arith.constant 0 : index
    %c0_0 = arith.constant 0 : index
    %0 = vector.load %arg1[%c0, %c0_0] : memref<8x128xf32, #tpu.memory_space<vmem>>, vector<8x128xf32>
    %cst = arith.constant dense<0.000000e+00> : vector<8xf32>
    %1 = vector.multi_reduction <add>, %0, %cst [1] : vector<8x128xf32> to vector<8xf32>
    %2 = vector.shape_cast %1 : vector<8xf32> to vector<8x1xf32>
    %cst_1 = arith.constant 3.125000e-02 : f32
    %3 = vector.broadcast %cst_1 : f32 to vector<8x1xf32>
    %4 = arith.mulf %2, %3 : vector<8x1xf32>
    %5 = vector.broadcast %4 : vector<8x1xf32> to vector<8x128xf32>
    %6 = arith.subf %0, %5 : vector<8x128xf32>
    %7 = arith.mulf %6, %6 : vector<8x128xf32>
    %cst_2 = arith.constant dense<0.000000e+00> : vector<8xf32>
    %8 = vector.multi_reduction <add>, %7, %cst_2 [1] : vector<8x128xf32> to vector<8xf32>
    %9 = vector.shape_cast %8 : vector<8xf32> to vector<8x1xf32>
    %10 = arith.mulf %4, %4 : vector<8x1xf32>
    %cst_3 = arith.constant 9.600000e+01 : f32
    %11 = vector.broadcast %cst_3 : f32 to vector<8x1xf32>
    %12 = arith.mulf %11, %10 : vector<8x1xf32>
    %13 = arith.subf %9, %12 : vector<8x1xf32>
    %cst_4 = arith.constant 3.125000e-02 : f32
    %14 = vector.broadcast %cst_4 : f32 to vector<8x1xf32>
    %15 = arith.mulf %13, %14 : vector<8x1xf32>
    %cst_5 = arith.constant 0.000000e+00 : f32
    %16 = vector.broadcast %cst_5 : f32 to vector<8x1xf32>
    %17 = arith.maximumf %15, %16 : vector<8x1xf32>
    %cst_6 = arith.constant 9.99999974E-6 : f32
    %18 = vector.broadcast %cst_6 : f32 to vector<8x1xf32>
    %19 = arith.addf %17, %18 : vector<8x1xf32>
    %20 = math.rsqrt %19 : vector<8x1xf32>
    %21 = vector.broadcast %20 : vector<8x1xf32> to vector<8x128xf32>
    %22 = arith.mulf %6, %21 : vector<8x128xf32>
    %23 = arith.truncf %22 : vector<8x128xf32> to vector<8x128xbf16>
    %c0_7 = arith.constant 0 : index
    %c0_8 = arith.constant 0 : index
    %24 = vector.load %arg2[%c0_7, %c0_8] : memref<128x128xbf16, #tpu.memory_space<vmem>>, vector<128x128xbf16>
    %cst_9 = arith.constant dense<0.000000e+00> : vector<8x128xf32>
    %25 = tpu.matmul %23, %24, %cst_9 {dimension_numbers = #tpu.dot_dimension_numbers<[1], [0], [0], [1], [0, 0, 1, 1], [], []>} : vector<8x128xbf16>, vector<128x128xbf16>, vector<8x128xf32> -> vector<8x128xf32>
    %c0_10 = arith.constant 0 : index
    %c0_11 = arith.constant 0 : index
    %26 = vector.load %arg3[%c0_10, %c0_11] : memref<1x128xf32, #tpu.memory_space<vmem>>, vector<1x128xf32>
    %27 = vector.broadcast %26 : vector<1x128xf32> to vector<8x128xf32>
    %28 = arith.addf %25, %27 : vector<8x128xf32>
    %cst_12 = arith.constant 5.000000e-01 : f32
    %29 = vector.broadcast %cst_12 : f32 to vector<8x128xf32>
    %30 = arith.mulf %29, %28 : vector<8x128xf32>
    %cst_13 = arith.constant 0.707106769 : f32
    %31 = vector.broadcast %cst_13 : f32 to vector<8x128xf32>
    %32 = arith.mulf %28, %31 : vector<8x128xf32>
    %33 = math.erf %32 : vector<8x128xf32>
    %cst_14 = arith.constant 1.000000e+00 : f32
    %34 = vector.broadcast %cst_14 : f32 to vector<8x128xf32>
    %35 = arith.addf %34, %33 : vector<8x128xf32>
    %36 = arith.mulf %30, %35 : vector<8x128xf32>
    %37 = arith.truncf %36 : vector<8x128xf32> to vector<8x128xbf16>
    %c0_15 = arith.constant 0 : index
    %c0_16 = arith.constant 0 : index
    %38 = vector.load %arg4[%c0_15, %c0_16] : memref<128x128xbf16, #tpu.memory_space<vmem>>, vector<128x128xbf16>
    %cst_17 = arith.constant dense<0.000000e+00> : vector<8x128xf32>
    %39 = tpu.matmul %37, %38, %cst_17 {dimension_numbers = #tpu.dot_dimension_numbers<[1], [0], [0], [1], [0, 0, 1, 1], [], []>} : vector<8x128xbf16>, vector<128x128xbf16>, vector<8x128xf32> -> vector<8x128xf32>
    %c0_18 = arith.constant 0 : index
    %c0_19 = arith.constant 0 : index
    %40 = vector.load %arg5[%c0_18, %c0_19] : memref<1x128xf32, #tpu.memory_space<vmem>>, vector<1x128xf32>
    %41 = vector.broadcast %40 : vector<1x128xf32> to vector<8x128xf32>
    %42 = arith.addf %39, %41 : vector<8x128xf32>
    %c0_20 = arith.constant 0 : index
    %c0_21 = arith.constant 0 : index
    %43 = vector.load %arg6[%c0_20, %c0_21] : memref<8x128xf32, #tpu.memory_space<vmem>>, vector<8x128xf32>
    tpu.vector_store %arg6[%c0_20, %c0_21], %42 {strides = array<i32>} : memref<8x128xf32, #tpu.memory_space<vmem>>, vector<8x128xf32>,
    return
  }
  func.func @transform_0(%arg0: i32) -> (i32, i32) {
    %c0_i32 = arith.constant 0 : i32
    %c0_i32_0 = arith.constant 0 : i32
    return %arg0, %c0_i32 : i32, i32
  }
  func.func @transform_1(%arg0: i32) -> (i32, i32) {
    %c0_i32 = arith.constant 0 : i32
    %c0_i32_0 = arith.constant 0 : i32
    %c0_i32_1 = arith.constant 0 : i32
    return %c0_i32, %c0_i32_0 : i32, i32
  }
  func.func @transform_2(%arg0: i32) -> (i32, i32) {
    %c0_i32 = arith.constant 0 : i32
    %c0_i32_0 = arith.constant 0 : i32
    %c0_i32_1 = arith.constant 0 : i32
    return %c0_i32, %c0_i32_0 : i32, i32
  }
  func.func @transform_3(%arg0: i32) -> (i32, i32) {
    %c0_i32 = arith.constant 0 : i32
    %c0_i32_0 = arith.constant 0 : i32
    %c0_i32_1 = arith.constant 0 : i32
    return %c0_i32, %c0_i32_0 : i32, i32
  }
  func.func @transform_4(%arg0: i32) -> (i32, i32) {
    %c0_i32 = arith.constant 0 : i32
    %c0_i32_0 = arith.constant 0 : i32
    %c0_i32_1 = arith.constant 0 : i32
    return %c0_i32, %c0_i32_0 : i32, i32
  }
  func.func @transform_5(%arg0: i32) -> (i32, i32) {
    %c0_i32 = arith.constant 0 : i32
    %c0_i32_0 = arith.constant 0 : i32
    return %arg0, %c0_i32 : i32, i32
  }
}

</mosaic_0001>

<llo_original>
// kernel: tpu_custom_call.1
$region0: #{tpu_custom_call.1}
  #allocation0 [shape = 'u32[]', space=smem, size = 0x4, offset = 0x4, fixed_abs, tag = 'smem constant byte address 0x4 - core index']
  #allocation1 [shape = 'u32[144,128]{1,0:T(1,128)}', space=vmem, size = 0x12000, scoped, tag = 'internal scratch']
  %s0 = inlined_call_operand.hbm [shape: f32[16,128], index: 0, kind: input, shape index: {}]
  %s1 = inlined_call_operand.hbm [shape: bf16[128,128], index: 1, kind: input, shape index: {}]
  %s2 = inlined_call_operand.vmem [shape: f32[1,128], index: 2, kind: input, shape index: {}]
  %s3 = inlined_call_operand.hbm [shape: bf16[128,128], index: 3, kind: input, shape index: {}]
  %s4 = inlined_call_operand.vmem [shape: f32[1,128], index: 4, kind: input, shape index: {}]
  %s5 = inlined_call_operand.hbm [shape: f32[16,128], index: 5, kind: output, shape index: {}]
  %s6 = sld [smem:[#allocation0]]
  $region65: #{tpu_custom_call.1} parent=0
    _
  %s8 = ssub.s32 1, %s6
  %s9 = scalar_select 0, %s8, %s6
  $region1: #{tpu_custom_call.1} parent=0
    #allocation2 [shape = 'u8[8192]{0}', space=vmem, size = 0x2000, scoped, tag = 'input window, operand 0']
    #allocation3 [shape = 's32[2]{0}', space=sflag, size = 0x8, scoped, tag = 'scoped memory for tpu_custom_call.1']
    #allocation4 [shape = 's32[2]{0}', space=sflag, size = 0x8, scoped, tag = 'scoped memory for tpu_custom_call.1']
    #allocation5 [shape = 'u8[32768]{0}', space=vmem, size = 0x8000, scoped, tag = 'input window, operand 1, single buffered']
    #allocation6 [shape = 's32[1]{0}', space=sflag, size = 0x4, scoped, tag = 'scoped memory for tpu_custom_call.1']
    #allocation7 [shape = 'u8[32768]{0}', space=vmem, size = 0x8000, scoped, tag = 'input window, operand 3, single buffered']
    #allocation8 [shape = 'u8[8192]{0}', space=vmem, size = 0x2000, scoped, tag = 'output window, operand 0']
    %10 = vsyncpa [#allocation3], 0
    %s11 = scalar_lea.sflag [#allocation3], 1
    %12 = vsyncpa %s11, 0
    %13 = vsyncpa [#allocation6], 0
    %14 = vsyncpa [#allocation4], 0
    %s15 = scalar_lea.sflag [#allocation4], 1
    %16 = vsyncpa %s15, 0
    loop: start=0, step=1, limit=4
    $region2: #{tpu_custom_call.1} parent=1 // loop_pre_header
      _
    $region3: #{tpu_custom_call.1} parent=1 // loop_header
      %s18 = sphi 0, %s22
      %p19 = scmp.ge.s32.totalorder %s18, 4
      %s28 = sphi 0, %s30
      %s31 = sphi 0, %s28
      %s32 = sphi 0, %s31
      %s48 = sphi 0, %s32
      %s52 = sphi 0, %s52
      %s54 = sphi 0, %s52
      %s55 = sphi 0, %s54
      %s69 = sphi 0, %s55
      %s73 = sphi 0, %s73
      %s75 = sphi 0, %s73
      %s76 = sphi 0, %s75
      %s90 = sphi 0, %s76
      %s94 = sphi 0, %s94
      %s96 = sphi 0, %s94
      %s97 = sphi 0, %s96
      %s111 = sphi 0, %s97
      %s115 = sphi 0, %s115
      %s117 = sphi 0, %s115
      %s118 = sphi 0, %s117
      %s132 = sphi 0, %s118
      %s138 = sphi 0, %s140
      %s141 = sphi 0, %s138
      %s142 = sphi 0, %s141
      %s158 = sphi 0, %s142
    $region4: #{tpu_custom_call.1} parent=1 // loop_header_branch
      %21 = sbr.rel (%p19) target = $region8
    $region5: #{tpu_custom_call.1} parent=1 // loop_body
      %s23 = ssub.s32 %s18, 1
      %s24 = ssub.s32 %s18, 2
      %s25 = sadd.s32 %s18, 1
      %s26 = ssub.s32 %s18, %s25
      %p27 = scmp.eq.s32.totalorder %s26, 0
      %s29 = sadd.s32 %s28, 1
      %s30 = scalar_select %p27, %s28, %s29
      %p33 = pneg %p27
      %p34 = scmp.eq.s32.totalorder %s18, 1
      %p35 = por %p33, %p34
      %p36 = scmp.ne.s32.totalorder %s28, %s31
      %p37 = scmp.eq.s32.totalorder %s18, 0
      %p38 = por %p36, %p37
      %p39 = scmp.ne.s32.totalorder %s28, %s31
      %p40 = scmp.eq.s32.totalorder %s23, 1
      %p41 = por %p39, %p40
      %p42 = scmp.ne.s32.totalorder %s31, %s32
      %p43 = scmp.eq.s32.totalorder %s23, 0
      %p44 = por %p42, %p43
      %p45 = scmp.ne.s32.totalorder %s31, %s32
      %p46 = scmp.eq.s32.totalorder %s24, 1
      %p47 = por %p45, %p46
      %p49 = scmp.ne.s32.totalorder %s32, %s48
      %p50 = scmp.eq.s32.totalorder %s24, 0
      %p51 = por %p49, %p50
      %s53 = sadd.s32 %s52, 1
      %p56 = scmp.eq.s32.totalorder %s18, 1
      %p57 = scmp.ne.s32.totalorder %s52, %s54
      %p58 = scmp.eq.s32.totalorder %s18, 0
      %p59 = por %p57, %p58
      %p60 = scmp.ne.s32.totalorder %s52, %s54
      %p61 = scmp.eq.s32.totalorder %s23, 1
      %p62 = por %p60, %p61
      %p63 = scmp.ne.s32.totalorder %s54, %s55
      %p64 = scmp.eq.s32.totalorder %s23, 0
      %p65 = por %p63, %p64
      %p66 = scmp.ne.s32.totalorder %s54, %s55
      %p67 = scmp.eq.s32.totalorder %s24, 1
      %p68 = por %p66, %p67
      %p70 = scmp.ne.s32.totalorder %s55, %s69
      %p71 = scmp.eq.s32.totalorder %s24, 0
      %p72 = por %p70, %p71
      %s74 = sadd.s32 %s73, 1
      %p77 = scmp.eq.s32.totalorder %s18, 1
      %p78 = scmp.ne.s32.totalorder %s73, %s75
      %p79 = scmp.eq.s32.totalorder %s18, 0
      %p80 = por %p78, %p79
      %p81 = scmp.ne.s32.totalorder %s73, %s75
      %p82 = scmp.eq.s32.totalorder %s23, 1
      %p83 = por %p81, %p82
      %p84 = scmp.ne.s32.totalorder %s75, %s76
      %p85 = scmp.eq.s32.totalorder %s23, 0
      %p86 = por %p84, %p85
      %p87 = scmp.ne.s32.totalorder %s75, %s76
      %p88 = scmp.eq.s32.totalorder %s24, 1
      %p89 = por %p87, %p88
      %p91 = scmp.ne.s32.totalorder %s76, %s90
      %p92 = scmp.eq.s32.totalorder %s24, 0
      %p93 = por %p91, %p92
      %s95 = sadd.s32 %s94, 1
      %p98 = scmp.eq.s32.totalorder %s18, 1
      %p99 = scmp.ne.s32.totalorder %s94, %s96
      %p100 = scmp.eq.s32.totalorder %s18, 0
      %p101 = por %p99, %p100
      %p102 = scmp.ne.s32.totalorder %s94, %s96
      %p103 = scmp.eq.s32.totalorder %s23, 1
      %p104 = por %p102, %p103
      %p105 = scmp.ne.s32.totalorder %s96, %s97
      %p106 = scmp.eq.s32.totalorder %s23, 0
      %p107 = por %p105, %p106
      %p108 = scmp.ne.s32.totalorder %s96, %s97
      %p109 = scmp.eq.s32.totalorder %s24, 1
      %p110 = por %p108, %p109
      %p112 = scmp.ne.s32.totalorder %s97, %s111
      %p113 = scmp.eq.s32.totalorder %s24, 0
      %p114 = por %p112, %p113
      %s116 = sadd.s32 %s115, 1
      %p119 = scmp.eq.s32.totalorder %s18, 1
      %p120 = scmp.ne.s32.totalorder %s115, %s117
      %p121 = scmp.eq.s32.totalorder %s18, 0
      %p122 = por %p120, %p121
      %p123 = scmp.ne.s32.totalorder %s115, %s117
      %p124 = scmp.eq.s32.totalorder %s23, 1
      %p125 = por %p123, %p124
      %p126 = scmp.ne.s32.totalorder %s117, %s118
      %p127 = scmp.eq.s32.totalorder %s23, 0
      %p128 = por %p126, %p127
      %p129 = scmp.ne.s32.totalorder %s117, %s118
      %p130 = scmp.eq.s32.totalorder %s24, 1
      %p131 = por %p129, %p130
      %p133 = scmp.ne.s32.totalorder %s118, %s132
      %p134 = scmp.eq.s32.totalorder %s24, 0
      %p135 = por %p133, %p134
      %s136 = ssub.s32 %s18, %s25
      %p137 = scmp.eq.s32.totalorder %s136, 0
      %s139 = sadd.s32 %s138, 1
      %s140 = scalar_select %p137, %s138, %s139
      %p143 = pneg %p137
      %p144 = scmp.eq.s32.totalorder %s18, 1
      %p145 = por %p143, %p144
      %p146 = scmp.ne.s32.totalorder %s138, %s141
      %p147 = scmp.eq.s32.totalorder %s18, 0
      %p148 = por %p146, %p147
      %p149 = scmp.ne.s32.totalorder %s138, %s141
      %p150 = scmp.eq.s32.totalorder %s23, 1
      %p151 = por %p149, %p150
      %p152 = scmp.ne.s32.totalorder %s141, %s142
      %p153 = scmp.eq.s32.totalorder %s23, 0
      %p154 = por %p152, %p153
      %p155 = scmp.ne.s32.totalorder %s141, %s142
      %p156 = scmp.eq.s32.totalorder %s24, 1
      %p157 = por %p155, %p156
      %p159 = scmp.ne.s32.totalorder %s142, %s158
      %p160 = scmp.eq.s32.totalorder %s24, 0
      %p161 = por %p159, %p160
      %p162 = scmp.le.s32.totalorder 1, %s18
      %p163 = scmp.lt.s32.totalorder %s18, 3
      %p164 = pnand %p162, %p163
      %p165 = pneg %p164
      // Predicated region
      $region9: #{tpu_custom_call.1} parent=5 // pred_check
        _
      $region10: #{tpu_custom_call.1} parent=5 // pred_check_branch
        %167 = sbr.rel (%p164) target = $region12
      $region11: #{tpu_custom_call.1} parent=5 // pred_region
        %s168 = ssub.s32 %s18, 1
        // Predicated region
        $region13: #{tpu_custom_call.1} parent=11 // pred_check
          %p169 = pneg %p65
        $region14: #{tpu_custom_call.1} parent=11 // pred_check_branch
          %171 = sbr.rel (%p169) target = $region16
        $region15: #{tpu_custom_call.1} parent=11 // pred_region
          %s173 = ssub.s32 1024, 1024
          %174 = vsyncadd [#allocation6], %s173
          %s175 = sshll.u32 [#allocation5], 4
          %s176 = int_to_ptr.vmem [resolvable:$true] %s175
          %181 = dma.hbm_to_vmem [thread:$0]  %s1, 1024, %s176, [#allocation6], 64, 64, 4
        $region16: #{tpu_custom_call.1} parent=11 // pred_fallthru
          _
        // Predicated region
        $region17: #{tpu_custom_call.1} parent=11 // pred_check
          %p182 = pneg %p86
        $region18: #{tpu_custom_call.1} parent=11 // pred_check_branch
          %184 = sbr.rel (%p182) target = $region20
        $region19: #{tpu_custom_call.1} parent=11 // pred_region
          _
        $region20: #{tpu_custom_call.1} parent=11 // pred_fallthru
          _
        // Predicated region
        $region21: #{tpu_custom_call.1} parent=11 // pred_check
          %p185 = pneg %p107
        $region22: #{tpu_custom_call.1} parent=11 // pred_check_branch
          %187 = sbr.rel (%p185) target = $region24
        $region23: #{tpu_custom_call.1} parent=11 // pred_region
          %s189 = ssub.s32 1024, 1024
          %190 = vsyncadd [#allocation6], %s189
          %s191 = sshll.u32 [#allocation7], 4
          %s192 = int_to_ptr.vmem [resolvable:$true] %s191
          %197 = dma.hbm_to_vmem [thread:$0]  %s3, 1024, %s192, [#allocation6], 64, 64, 4
        $region24: #{tpu_custom_call.1} parent=11 // pred_fallthru
          _
        // Predicated region
        $region25: #{tpu_custom_call.1} parent=11 // pred_check
          %p198 = pneg %p128
        $region26: #{tpu_custom_call.1} parent=11 // pred_check_branch
          %200 = sbr.rel (%p198) target = $region28
        $region27: #{tpu_custom_call.1} parent=11 // pred_region
          _
        $region28: #{tpu_custom_call.1} parent=11 // pred_fallthru
          _
      $region12: #{tpu_custom_call.1} parent=5 // pred_fallthru
        _
      %p201 = scmp.lt.s32.totalorder %s18, 2
      // Predicated region
      $region29: #{tpu_custom_call.1} parent=5 // pred_check
        %p202 = pneg %p201
      $region30: #{tpu_custom_call.1} parent=5 // pred_check_branch
        %204 = sbr.rel (%p202) target = $region32
      $region31: #{tpu_custom_call.1} parent=5 // pred_region
        // Predicated region
        $region33: #{tpu_custom_call.1} parent=31 // pred_check
          %p205 = pneg %p38
        $region34: #{tpu_custom_call.1} parent=31 // pred_check_branch
          %207 = sbr.rel (%p205) target = $region36
        $region35: #{tpu_custom_call.1} parent=31 // pred_region
          %s208 = sand.u32 %s28, 1
          %s209 = scalar_lea.sflag [#allocation3], %s208
          %s210 = sand.u32 %s28, 1
          %s211 = smul.addr %s210, 8
          %s212 = scalar_lea.vmem [#allocation2], %s211
          %s214 = ssub.s32 128, 128
          %215 = vsyncadd %s209, %s214
          %s216 = smul.addr %s18, 128
          %s217 = scalar_lea.hbm %s0, %s216
          %s219 = sshll.u32 %s212, 4
          %s220 = int_to_ptr.vmem [resolvable:$true] %s219
          %222 = dma.hbm_to_vmem [thread:$0]  %s217, 128, %s220, %s209
        $region36: #{tpu_custom_call.1} parent=31 // pred_fallthru
          _
      $region32: #{tpu_custom_call.1} parent=5 // pred_fallthru
        _
      %p223 = scmp.le.s32.totalorder 1, %s18
      %p224 = scmp.lt.s32.totalorder %s18, 3
      %p225 = pnand %p223, %p224
      %p226 = pneg %p225
      // Predicated region
      $region37: #{tpu_custom_call.1} parent=5 // pred_check
        _
      $region38: #{tpu_custom_call.1} parent=5 // pred_check_branch
        %228 = sbr.rel (%p225) target = $region40
      $region39: #{tpu_custom_call.1} parent=5 // pred_region
        %s229 = ssub.s32 %s18, 1
        %s230 = sand.u32 %s31, 1
        %s231 = scalar_lea.sflag [#allocation3], %s230
        %s232 = sand.u32 %s31, 1
        %s233 = smul.addr %s232, 8
        %s234 = scalar_lea.vmem [#allocation2], %s233
        // Predicated region
        $region41: #{tpu_custom_call.1} parent=39 // pred_check
          %p235 = pneg %p44
        $region42: #{tpu_custom_call.1} parent=39 // pred_check_branch
          %237 = sbr.rel (%p235) target = $region44
        $region43: #{tpu_custom_call.1} parent=39 // pred_region
          %238 = dma.done %s231, 128
        $region44: #{tpu_custom_call.1} parent=39 // pred_fallthru
          _
        // Predicated region
        $region45: #{tpu_custom_call.1} parent=39 // pred_check
          %p239 = pneg %p65
        $region46: #{tpu_custom_call.1} parent=39 // pred_check_branch
          %241 = sbr.rel (%p239) target = $region48
        $region47: #{tpu_custom_call.1} parent=39 // pred_region
          %242 = dma.done [#allocation6], 1024
        $region48: #{tpu_custom_call.1} parent=39 // pred_fallthru
          _
        // Predicated region
        $region49: #{tpu_custom_call.1} parent=39 // pred_check
          %p243 = pneg %p107
        $region50: #{tpu_custom_call.1} parent=39 // pred_check_branch
          %245 = sbr.rel (%p243) target = $region52
        $region51: #{tpu_custom_call.1} parent=39 // pred_region
          %246 = dma.done [#allocation6], 1024
        $region52: #{tpu_custom_call.1} parent=39 // pred_fallthru
          _
        %s247 = sand.u32 %s31, 1
        %s248 = scalar_lea.sflag [#allocation3], %s247
        %s249 = sand.u32 %s31, 1
        %s250 = smul.addr %s249, 8
        %s251 = scalar_lea.vmem [#allocation2], %s250
        %p252 = pneg %p44
        %p253 = pneg %p41
        %p254 = pneg %p65
        %p255 = pneg %p62
        %p256 = pneg %p86
        %p257 = pneg %p83
        %p258 = pneg %p107
        %p259 = pneg %p104
        %p260 = pneg %p128
        %p261 = pneg %p125
        %p262 = pneg %p154
        %p263 = pneg %p151
        %s264 = sand.u32 %s141, 1
        %s265 = scalar_lea.sflag [#allocation4], %s264
        %s266 = sand.u32 %s141, 1
        %s267 = smul.addr %s266, 8
        %s268 = scalar_lea.vmem [#allocation8], %s267
        %v270 = vld [vmem:[%s234] sm:$0xff]
        %271 = vadd.xlane.f32.xlu0 %v270
        %v272 = vpop.xlane.xlu0 %271
        %v273 = vmul.f32 %v272, 0.03125
        %v274 = vsub.f32 %v270, %v273
        %v275 = vmul.f32 %v274, %v274
        %276 = vadd.xlane.f32.xlu0 %v275
        %v277 = vpop.xlane.xlu0 %276
        %v278 = vmul.f32 %v273, %v273
        %v279 = vmul.f32 %v278, 96.0
        %v280 = vsub.f32 %v277, %v279
        %v281 = vmul.f32 %v280, 0.03125
        %v282 = vmax.f32 %v281, 0.0
        %v283 = vadd.f32 %v282, 1e-05
        %v284 = vrsqrt.pop %v283
        %v285 = vmul.f32 %v274, %v284
        %v286 = vpack.c.bf16 %v285, %v285
        %v287 = vld [vmem:[#allocation5] sm:$0xf]
        %v288 = vld [vmem:[#allocation5 + $0x4] sm:$0xf]
        %v289 = vld [vmem:[#allocation5 + $0x8] sm:$0xf]
        %v290 = vld [vmem:[#allocation5 + $0xc] sm:$0xf]
        %v291 = vld [vmem:[#allocation5 + $0x10] sm:$0xf]
        %v292 = vld [vmem:[#allocation5 + $0x14] sm:$0xf]
        %v293 = vld [vmem:[#allocation5 + $0x18] sm:$0xf]
        %v294 = vld [vmem:[#allocation5 + $0x1c] sm:$0xf]
        %v295 = vld [vmem:[#allocation5 + $0x20] sm:$0xf]
        %v296 = vld [vmem:[#allocation5 + $0x24] sm:$0xf]
        %v297 = vld [vmem:[#allocation5 + $0x28] sm:$0xf]
        %v298 = vld [vmem:[#allocation5 + $0x2c] sm:$0xf]
        %v299 = vld [vmem:[#allocation5 + $0x30] sm:$0xf]
        %v300 = vld [vmem:[#allocation5 + $0x34] sm:$0xf]
        %v301 = vld [vmem:[#allocation5 + $0x38] sm:$0xf]
        %v302 = vld [vmem:[#allocation5 + $0x3c] sm:$0xf]
        %v303 = vld [vmem:[%s2] sm:$0x1]
        %v305 = vlaneseq
        %v306 = vshrl.u32 %v305, 7
        %v307 = vsub.s32 0, %v306
        %v308 = vrot.slane %v303, %v307
        %v326 = vunpack.c.l.b16 %v287
        %v327 = vunpack.c.l.b16 %v288
        %v328 = vunpack.c.l.b16 %v289
        %v329 = vunpack.c.l.b16 %v290
        %v330 = vunpack.c.l.b16 %v291
        %v331 = vunpack.c.l.b16 %v292
        %v332 = vunpack.c.l.b16 %v293
        %v333 = vunpack.c.l.b16 %v294
        %v334 = vunpack.c.l.b16 %v295
        %v335 = vunpack.c.l.b16 %v296
        %v336 = vunpack.c.l.b16 %v297
        %v337 = vunpack.c.l.b16 %v298
        %v338 = vunpack.c.l.b16 %v299
        %v339 = vunpack.c.l.b16 %v300
        %v340 = vunpack.c.l.b16 %v301
        %v341 = vunpack.c.l.b16 %v302
        %v342 = vpack.c.b16 %v327, %v326
        %v343 = vpack.c.b16 %v329, %v328
        %v344 = vpack.c.b16 %v331, %v330
        %v345 = vpack.c.b16 %v333, %v332
        %v346 = vpack.c.b16 %v335, %v334
        %v347 = vpack.c.b16 %v337, %v336
        %v348 = vpack.c.b16 %v339, %v338
        %v349 = vpack.c.b16 %v341, %v340
        %358 = vmatprep.subr.bf16.mxu0 0
        %359 = vmatpush1.bf16.msra.mxu0 %v349
        %360 = vmatprep.subr.bf16.mxu0 0
        %361 = vmatpush1.bf16.msra.mxu0 %v348
        %362 = vmatprep.subr.bf16.mxu0 0
        %363 = vmatpush1.bf16.msra.mxu0 %v347
        %364 = vmatprep.subr.bf16.mxu0 0
        %365 = vmatpush1.bf16.msra.mxu0 %v346
        %366 = vmatprep.subr.bf16.mxu0 0
        %367 = vmatpush1.bf16.msra.mxu0 %v345
        %368 = vmatprep.subr.bf16.mxu0 0
        %369 = vmatpush1.bf16.msra.mxu0 %v344
        %370 = vmatprep.subr.bf16.mxu0 0
        %371 = vmatpush1.bf16.msra.mxu0 %v343
        %372 = vmatprep.subr.bf16.mxu0 0
        %373 = vmatpush1.bf16.msra.mxu0 %v342
        %374 = vmatprep.subr.bf16.mxu0 0
        %375 = vmatpush2.bf16.msra.mxu0 0
        %376 = vmatprep.subr.bf16.mxu0 0
        %377 = vmatpush2.bf16.msra.mxu0 0
        %378 = vmatprep.subr.bf16.mxu0 0
        %379 = vmatpush2.bf16.msra.mxu0 0
        %380 = vmatprep.subr.bf16.mxu0 0
        %381 = vmatpush2.bf16.msra.mxu0 0
        %382 = vmatprep.subr.bf16.mxu0 0
        %383 = vmatpush2.bf16.msra.mxu0 0
        %384 = vmatprep.subr.bf16.mxu0 0
        %385 = vmatpush2.bf16.msra.mxu0 0
        %386 = vmatprep.subr.bf16.mxu0 0
        %387 = vmatpush2.bf16.msra.mxu0 0
        %388 = vmatprep.subr.bf16.mxu0 0
        %389 = vmatpush2.bf16.msra.mxu0 0
        %390 = vmatprep.mubr.bf16.mxu0 0
        %391 = vmatmul.mubr.bf16.gmra.mxu0 %v286
        %v392 = vpop.f32.mrf.mxu0
        %v393 = vadd.f32 %v308, %v392
        %v394 = vpop.f32.mrf.mxu0
        %v395 = vpop.f32.mrf.mxu0
        %v396 = vpop.f32.mrf.mxu0
        %397 = vdwg.mxu0
        %v398 = vmul.f32 %v393, 0.5
        %v399 = vmul.f32 %v393, 0.70710677
        %v400 = verf.f32.pop %v399
        %v401 = vadd.f32 %v400, 1.0
        %v402 = vmul.f32 %v398, %v401
        %v403 = vpack.c.bf16 %v402, %v402
        %v404 = vld [vmem:[#allocation7] sm:$0xf]
        %v405 = vld [vmem:[#allocation7 + $0x4] sm:$0xf]
        %v406 = vld [vmem:[#allocation7 + $0x8] sm:$0xf]
        %v407 = vld [vmem:[#allocation7 + $0xc] sm:$0xf]
        %v408 = vld [vmem:[#allocation7 + $0x10] sm:$0xf]
        %v409 = vld [vmem:[#allocation7 + $0x14] sm:$0xf]
        %v410 = vld [vmem:[#allocation7 + $0x18] sm:$0xf]
        %v411 = vld [vmem:[#allocation7 + $0x1c] sm:$0xf]
        %v412 = vld [vmem:[#allocation7 + $0x20] sm:$0xf]
        %v413 = vld [vmem:[#allocation7 + $0x24] sm:$0xf]
        %v414 = vld [vmem:[#allocation7 + $0x28] sm:$0xf]
        %v415 = vld [vmem:[#allocation7 + $0x2c] sm:$0xf]
        %v416 = vld [vmem:[#allocation7 + $0x30] sm:$0xf]
        %v417 = vld [vmem:[#allocation7 + $0x34] sm:$0xf]
        %v418 = vld [vmem:[#allocation7 + $0x38] sm:$0xf]
        %v419 = vld [vmem:[#allocation7 + $0x3c] sm:$0xf]
        %v420 = vld [vmem:[%s4] sm:$0x1]
        %v422 = vlaneseq
        %v423 = vshrl.u32 %v422, 7
        %v424 = vsub.s32 0, %v423
        %v425 = vrot.slane %v420, %v424
        %v443 = vunpack.c.l.b16 %v404
        %v444 = vunpack.c.l.b16 %v405
        %v445 = vunpack.c.l.b16 %v406
        %v446 = vunpack.c.l.b16 %v407
        %v447 = vunpack.c.l.b16 %v408
        %v448 = vunpack.c.l.b16 %v409
        %v449 = vunpack.c.l.b16 %v410
        %v450 = vunpack.c.l.b16 %v411
        %v451 = vunpack.c.l.b16 %v412
        %v452 = vunpack.c.l.b16 %v413
        %v453 = vunpack.c.l.b16 %v414
        %v454 = vunpack.c.l.b16 %v415
        %v455 = vunpack.c.l.b16 %v416
        %v456 = vunpack.c.l.b16 %v417
        %v457 = vunpack.c.l.b16 %v418
        %v458 = vunpack.c.l.b16 %v419
        %v459 = vpack.c.b16 %v444, %v443
        %v460 = vpack.c.b16 %v446, %v445
        %v461 = vpack.c.b16 %v448, %v447
        %v462 = vpack.c.b16 %v450, %v449
        %v463 = vpack.c.b16 %v452, %v451
        %v464 = vpack.c.b16 %v454, %v453
        %v465 = vpack.c.b16 %v456, %v455
        %v466 = vpack.c.b16 %v458, %v457
        %475 = vmatprep.subr.bf16.mxu0 0
        %476 = vmatpush1.bf16.msra.mxu0 %v466
        %477 = vmatprep.subr.bf16.mxu0 0
        %478 = vmatpush1.bf16.msra.mxu0 %v465
        %479 = vmatprep.subr.bf16.mxu0 0
        %480 = vmatpush1.bf16.msra.mxu0 %v464
        %481 = vmatprep.subr.bf16.mxu0 0
        %482 = vmatpush1.bf16.msra.mxu0 %v463
        %483 = vmatprep.subr.bf16.mxu0 0
        %484 = vmatpush1.bf16.msra.mxu0 %v462
        %485 = vmatprep.subr.bf16.mxu0 0
        %486 = vmatpush1.bf16.msra.mxu0 %v461
        %487 = vmatprep.subr.bf16.mxu0 0
        %488 = vmatpush1.bf16.msra.mxu0 %v460
        %489 = vmatprep.subr.bf16.mxu0 0
        %490 = vmatpush1.bf16.msra.mxu0 %v459
        %491 = vmatprep.subr.bf16.mxu0 0
        %492 = vmatpush2.bf16.msra.mxu0 0
        %493 = vmatprep.subr.bf16.mxu0 0
        %494 = vmatpush2.bf16.msra.mxu0 0
        %495 = vmatprep.subr.bf16.mxu0 0
        %496 = vmatpush2.bf16.msra.mxu0 0
        %497 = vmatprep.subr.bf16.mxu0 0
        %498 = vmatpush2.bf16.msra.mxu0 0
        %499 = vmatprep.subr.bf16.mxu0 0
        %500 = vmatpush2.bf16.msra.mxu0 0
        %501 = vmatprep.subr.bf16.mxu0 0
        %502 = vmatpush2.bf16.msra.mxu0 0
        %503 = vmatprep.subr.bf16.mxu0 0
        %504 = vmatpush2.bf16.msra.mxu0 0
        %505 = vmatprep.subr.bf16.mxu0 0
        %506 = vmatpush2.bf16.msra.mxu0 0
        %507 = vmatprep.mubr.bf16.mxu0 0
        %508 = vmatmul.mubr.bf16.gmra.mxu0 %v403
        %v509 = vpop.f32.mrf.mxu0
        %v510 = vadd.f32 %v425, %v509
        %v511 = vpop.f32.mrf.mxu0
        %v512 = vpop.f32.mrf.mxu0
        %v513 = vpop.f32.mrf.mxu0
        %514 = vdwg.mxu0
        %515 = vst [vmem:[%s268] sm:$0xff] %v510
        %s516 = sand.u32 %s141, 1
        %s517 = scalar_lea.sflag [#allocation4], %s516
        %s518 = sand.u32 %s141, 1
        %s519 = smul.addr %s518, 8
        %s520 = scalar_lea.vmem [#allocation8], %s519
        // Predicated region
        $region53: #{tpu_custom_call.1} parent=39 // pred_check
          %p521 = pneg %p151
        $region54: #{tpu_custom_call.1} parent=39 // pred_check_branch
          %523 = sbr.rel (%p521) target = $region56
        $region55: #{tpu_custom_call.1} parent=39 // pred_region
          %s525 = ssub.s32 128, 128
          %526 = vsyncadd %s517, %s525
          %s527 = smul.addr %s23, 128
          %s528 = scalar_lea.hbm %s5, %s527
          %s530 = sshll.u32 %s520, 4
          %s531 = int_to_ptr.vmem [resolvable:$true] %s530
          %533 = dma.vmem_to_hbm [thread:$0]  %s531, 128, %s528, %s517
        $region56: #{tpu_custom_call.1} parent=39 // pred_fallthru
          _
      $region40: #{tpu_custom_call.1} parent=5 // pred_fallthru
        _
      %p534 = scmp.le.s32.totalorder 2, %s18
      // Predicated region
      $region57: #{tpu_custom_call.1} parent=5 // pred_check
        %p535 = pneg %p534
      $region58: #{tpu_custom_call.1} parent=5 // pred_check_branch
        %537 = sbr.rel (%p535) target = $region60
      $region59: #{tpu_custom_call.1} parent=5 // pred_region
        %s538 = ssub.s32 %s18, 2
        // Predicated region
        $region61: #{tpu_custom_call.1} parent=59 // pred_check
          %p539 = pneg %p157
        $region62: #{tpu_custom_call.1} parent=59 // pred_check_branch
          %541 = sbr.rel (%p539) target = $region64
        $region63: #{tpu_custom_call.1} parent=59 // pred_region
          %s542 = sand.u32 %s142, 1
          %s543 = scalar_lea.sflag [#allocation4], %s542
          %s544 = sand.u32 %s142, 1
          %s545 = smul.addr %s544, 8
          %s546 = scalar_lea.vmem [#allocation8], %s545
          %547 = dma.done %s543, 128
        $region64: #{tpu_custom_call.1} parent=59 // pred_fallthru
          _
      $region60: #{tpu_custom_call.1} parent=5 // pred_fallthru
        _
    $region6: #{tpu_custom_call.1} parent=1 // loop_footer
      %s22 = sadd.s32 1, %s18
    $region7: #{tpu_custom_call.1} parent=1 // loop_footer_branch
      %17 = sbr.rel target = $region3
    $region8: #{tpu_custom_call.1} parent=1 // loop_exit
      _
    %548 = vsyncpa [#allocation3], 1
    %s549 = scalar_lea.sflag [#allocation3], 1
    %550 = vsyncpa %s549, 1
    %551 = vsyncpa [#allocation6], 1
    %552 = vsyncpa [#allocation4], 1
    %s553 = scalar_lea.sflag [#allocation4], 1
    %554 = vsyncpa %s553, 1

</llo_original>
